<compile_context>
chip_gen: v7x
topology: tpu7x:2x2x1
jax: 0.10.0
libtpu: 0.0.40
codegen_flags: <defaults>
</compile_context>

<pallas_src>
import functools

import jax
import jax.numpy as jnp
import numpy as np
from jax.experimental import pallas as pl
from jax.experimental.pallas import tpu as pltpu


# ----------------------------------------------------------------------------- kernel
def _encoder_kernel(T, B, H, d_z,
                    xin_ref, w_in_ref, b_in_ref, w_hh_ref,
                    w_head_ref, b_head_ref, eps_ref, out_ref):
    H2 = 2 * H  # fused [forward | backward] state width

    # ---- Prologue (time-parallel, off the serial chain): input projection for
    #      both directions & all gates in one MXU call: (T*B,2F)@(2F,8H)+bias.
    gx = (jnp.dot(xin_ref[...], w_in_ref[...], preferred_element_type=jnp.float32)
          + b_in_ref[...])                                    # (T*B, 8H)

    whh = w_hh_ref[...]                                       # (2H, 8H), hoisted load
    h = jnp.zeros((B, H2), jnp.float32)                       # [h_fwd | h_bwd]
    c = jnp.zeros((B, H2), jnp.float32)                       # [c_fwd | c_bwd]

    # ---- Serial recurrence: one fused recurrent matmul per step for both
    #      directions. T is small and static -> full unroll.
    for t in range(T):
        g = gx[t * B:(t + 1) * B, :] + jnp.dot(
            h, whh, preferred_element_type=jnp.float32)       # (B, 8H)
        # fused gate layout: [i_f i_b | f_f f_b | g_f g_b | o_f o_b]
        i_g = jax.nn.sigmoid(g[:, 0 * H2:1 * H2])
        f_g = jax.nn.sigmoid(g[:, 1 * H2:2 * H2])
        g_g = jnp.tanh(g[:, 2 * H2:3 * H2])
        o_g = jax.nn.sigmoid(g[:, 3 * H2:4 * H2])
        c = f_g * c + i_g * g_g
        h = o_g * jnp.tanh(c)

    # ---- Heads. h == concat([h_fwd, h_bwd], -1) == einops 'fb b h -> b (fb h)'.
    head = (jnp.dot(h, w_head_ref[...], preferred_element_type=jnp.float32)
            + b_head_ref[...])                                # (B, 2*d_z) = [mu | sigma_hat]
    mu = head[:, :d_z]
    sigma = jnp.exp(head[:, d_z:] * 0.5)
    z = mu + sigma * eps_ref[...]

    # packed lane-dense output slab [z | mu | sigma]
    out_ref[...] = jnp.concatenate([z, mu, sigma], axis=-1)


# ----------------------------------------------------------------------------- wrapper
def _interleave_gate_cols(wf, wb):
    """Fuse per-direction gate weights into one matrix with column layout
    [i_f i_b | f_f f_b | g_f g_b | o_f o_b].  wf:(m,4H), wb:(n,4H) -> (m+n,8H);
    rows 0:m feed only forward-gate columns, rows m:m+n only backward ones."""
    m, H4 = wf.shape
    n = wb.shape[0]
    H = H4 // 4
    top = jnp.concatenate([wf.reshape(m, 4, H), jnp.zeros((m, 4, H), wf.dtype)], axis=-1)
    bot = jnp.concatenate([jnp.zeros((n, 4, H), wb.dtype), wb.reshape(n, 4, H)], axis=-1)
    return jnp.concatenate([top, bot], axis=0).reshape(m + n, 8 * H)


def _interleave_gate_bias(bf, bb):
    H = bf.shape[-1] // 4
    return jnp.concatenate(
        [bf.reshape(1, 4, H), bb.reshape(1, 4, H)], axis=-1).reshape(1, 8 * H)


def encoder_forward(x, params, eps):
    """x: (T, B, 5) float32, eps: (B, d_z) standard-normal noise -> (z, mu, sigma)."""
    T, B, F = x.shape
    H = params["whh_f"].shape[0]
    d_z = params["wmu"].shape[1]

    # Layout plumbing (once per call, outside the serial path):
    #   xin[t] = [x[t] | x[T-1-t]]  -> single resident VMEM block, x passed once.
    xin = jnp.concatenate([x, x[::-1]], axis=-1).reshape(T * B, 2 * F)
    w_in = _interleave_gate_cols(params["wih_f"], params["wih_b"])     # (2F, 8H)
    b_in = _interleave_gate_bias(params["b_f"], params["b_b"])         # (1, 8H)
    w_hh = _interleave_gate_cols(params["whh_f"], params["whh_b"])     # (2H, 8H)
    w_head = jnp.concatenate([params["wmu"], params["wsig"]], axis=-1)  # (2H, 2*d_z)
    b_head = jnp.concatenate([params["bmu"], params["bsig"]], axis=-1)  # (1, 2*d_z)

    vmem = pl.BlockSpec(memory_space=pltpu.MemorySpace.VMEM)
    packed = pl.pallas_call(
        functools.partial(_encoder_kernel, T, B, H, d_z),
        out_shape=jax.ShapeDtypeStruct((B, 3 * d_z), jnp.float32),
        in_specs=[vmem] * 7,
        out_specs=vmem,
    )(xin, w_in, b_in, w_hh, w_head, b_head, eps)

    z = packed[:, 0 * d_z:1 * d_z]
    mu = packed[:, 1 * d_z:2 * d_z]
    sigma = packed[:, 2 * d_z:3 * d_z]
    return z, mu, sigma


# ----------------------------------------------------------------------------- params / reference
def init_params(key, d_z, H, in_feat=5):
    k = 1.0 / np.sqrt(H)
    keys = jax.random.split(key, 12)
    u = lambda kk, shape, s: jax.random.uniform(kk, shape, jnp.float32, -s, s)
    # biases stored as (1, 4H): b_ih + b_hh folded into one term
    return {
        "wih_f": u(keys[0], (in_feat, 4 * H), k),
        "whh_f": u(keys[1], (H, 4 * H), k),
        "b_f":   u(keys[2], (1, 4 * H), k) + u(keys[3], (1, 4 * H), k),
        "wih_b": u(keys[4], (in_feat, 4 * H), k),
        "whh_b": u(keys[5], (H, 4 * H), k),
        "b_b":   u(keys[6], (1, 4 * H), k) + u(keys[7], (1, 4 * H), k),
        "wmu":   u(keys[8], (2 * H, d_z), 1.0 / np.sqrt(2 * H)),
        "bmu":   u(keys[9], (1, d_z), 1.0 / np.sqrt(2 * H)),
        "wsig":  u(keys[10], (2 * H, d_z), 1.0 / np.sqrt(2 * H)),
        "bsig":  u(keys[11], (1, d_z), 1.0 / np.sqrt(2 * H)),
    }


def _reference_forward(x, params, eps):
    """Pure-jnp reference of the PyTorch forward (per-direction weights)."""
    T, B, _ = x.shape
    H = params["whh_f"].shape[0]

    def run_dir(seq, wih, whh, b):
        h = jnp.zeros((B, H), jnp.float32)
        c = jnp.zeros((B, H), jnp.float32)
        for t in range(T):
            g = seq[t] @ wih + h @ whh + b
            i = jax.nn.sigmoid(g[:, 0 * H:1 * H])
            f = jax.nn.sigmoid(g[:, 1 * H:2 * H])
            gg = jnp.tanh(g[:, 2 * H:3 * H])
            o = jax.nn.sigmoid(g[:, 3 * H:4 * H])
            c = f * c + i * gg
            h = o * jnp.tanh(c)
        return h

    h_f = run_dir(x, params["wih_f"], params["whh_f"], params["b_f"])
    h_b = run_dir(x[::-1], params["wih_b"], params["whh_b"], params["b_b"])
    hidden = jnp.concatenate([h_f, h_b], axis=-1)
    mu = hidden @ params["wmu"] + params["bmu"]
    sigma = jnp.exp((hidden @ params["wsig"] + params["bsig"]) * 0.5)
    z = mu + sigma * eps
    return z, mu, sigma


# ----------------------------------------------------------------------------- main
if __name__ == "__main__":
    T, B, H, d_z = 8, 2, 32, 16
    key = jax.random.PRNGKey(0)
    k_x, k_p, k_eps = jax.random.split(key, 3)

    x = jax.random.normal(k_x, (T, B, 5), jnp.float32)
    params = init_params(k_p, d_z, H)
    # TODO(synk): torch.normal is drawn at forward time; noise is passed in
    # explicitly here (could use pltpu.prng_* in-kernel, kept external for
    # deterministic correctness checking).
    eps = jax.random.normal(k_eps, (B, d_z), jnp.float32)

    z, mu, sigma = encoder_forward(x, params, eps)
    jax.block_until_ready((z, mu, sigma))

    z_r, mu_r, sig_r = _reference_forward(x, params, eps)
    np.testing.assert_allclose(np.asarray(mu), np.asarray(mu_r), rtol=1e-4, atol=1e-4)
    np.testing.assert_allclose(np.asarray(sigma), np.asarray(sig_r), rtol=1e-4, atol=1e-4)
    np.testing.assert_allclose(np.asarray(z), np.asarray(z_r), rtol=1e-4, atol=1e-4)

    print("KERNEL_OK")
</pallas_src>

<mosaic_0001>
module attributes {stable_mosaic.version = 11 : i64} {
  func.func @_encoder_kernel(%arg0: memref<16x10xf32, #tpu.memory_space<vmem>>, %arg1: memref<10x256xf32, #tpu.memory_space<vmem>>, %arg2: memref<1x256xf32, #tpu.memory_space<vmem>>, %arg3: memref<64x256xf32, #tpu.memory_space<vmem>>, %arg4: memref<64x32xf32, #tpu.memory_space<vmem>>, %arg5: memref<1x32xf32, #tpu.memory_space<vmem>>, %arg6: memref<2x16xf32, #tpu.memory_space<vmem>>, %arg7: memref<2x48xf32, #tpu.memory_space<vmem>>) attributes {dimension_semantics = [], scalar_prefetch = 0 : i64, scratch_operands = 0 : i64, tpu.core_type = #tpu.core_type<tc>} {
    %c0 = arith.constant 0 : index
    %c0_0 = arith.constant 0 : index
    %0 = vector.load %arg0[%c0, %c0_0] : memref<16x10xf32, #tpu.memory_space<vmem>>, vector<16x10xf32>
    %c0_1 = arith.constant 0 : index
    %c0_2 = arith.constant 0 : index
    %1 = vector.load %arg1[%c0_1, %c0_2] : memref<10x256xf32, #tpu.memory_space<vmem>>, vector<10x256xf32>
    %cst = arith.constant dense<0.000000e+00> : vector<16x256xf32>
    %2 = tpu.matmul %0, %1, %cst {dimension_numbers = #tpu.dot_dimension_numbers<[1], [0], [0], [1], [0, 0, 1, 1], [], []>} : vector<16x10xf32>, vector<10x256xf32>, vector<16x256xf32> -> vector<16x256xf32>
    %c0_3 = arith.constant 0 : index
    %c0_4 = arith.constant 0 : index
    %3 = vector.load %arg2[%c0_3, %c0_4] : memref<1x256xf32, #tpu.memory_space<vmem>>, vector<1x256xf32>
    %4 = vector.broadcast %3 : vector<1x256xf32> to vector<16x256xf32>
    %5 = arith.addf %2, %4 : vector<16x256xf32>
    %c0_5 = arith.constant 0 : index
    %c0_6 = arith.constant 0 : index
    %6 = vector.load %arg3[%c0_5, %c0_6] : memref<64x256xf32, #tpu.memory_space<vmem>>, vector<64x256xf32>
    %cst_7 = arith.constant 0.000000e+00 : f32
    %7 = vector.broadcast %cst_7 : f32 to vector<2x64xf32>
    %cst_8 = arith.constant 0.000000e+00 : f32
    %8 = vector.broadcast %cst_8 : f32 to vector<2x64xf32>
    %9 = vector.extract_strided_slice %5 {offsets = [0, 0], sizes = [2, 256], strides = [1, 1]} : vector<16x256xf32> to vector<2x256xf32>
    %cst_9 = arith.constant dense<0.000000e+00> : vector<2x256xf32>
    %10 = tpu.matmul %7, %6, %cst_9 {dimension_numbers = #tpu.dot_dimension_numbers<[1], [0], [0], [1], [0, 0, 1, 1], [], []>} : vector<2x64xf32>, vector<64x256xf32>, vector<2x256xf32> -> vector<2x256xf32>
    %11 = arith.addf %9, %10 : vector<2x256xf32>
    %12 = vector.extract_strided_slice %11 {offsets = [0, 0], sizes = [2, 64], strides = [1, 1]} : vector<2x256xf32> to vector<2x64xf32>
    %13 = arith.negf %12 : vector<2x64xf32>
    %14 = math.exp %13 : vector<2x64xf32>
    %cst_10 = arith.constant 1.000000e+00 : f32
    %15 = vector.broadcast %cst_10 : f32 to vector<2x64xf32>
    %16 = arith.addf %15, %14 : vector<2x64xf32>
    %17 = arith.divf %15, %16 : vector<2x64xf32>
    %18 = vector.extract_strided_slice %11 {offsets = [0, 64], sizes = [2, 64], strides = [1, 1]} : vector<2x256xf32> to vector<2x64xf32>
    %19 = arith.negf %18 : vector<2x64xf32>
    %20 = math.exp %19 : vector<2x64xf32>
    %cst_11 = arith.constant 1.000000e+00 : f32
    %21 = vector.broadcast %cst_11 : f32 to vector<2x64xf32>
    %22 = arith.addf %21, %20 : vector<2x64xf32>
    %23 = arith.divf %21, %22 : vector<2x64xf32>
    %24 = vector.extract_strided_slice %11 {offsets = [0, 128], sizes = [2, 64], strides = [1, 1]} : vector<2x256xf32> to vector<2x64xf32>
    %25 = math.tanh %24 : vector<2x64xf32>
    %26 = vector.extract_strided_slice %11 {offsets = [0, 192], sizes = [2, 64], strides = [1, 1]} : vector<2x256xf32> to vector<2x64xf32>
    %27 = arith.negf %26 : vector<2x64xf32>
    %28 = math.exp %27 : vector<2x64xf32>
    %cst_12 = arith.constant 1.000000e+00 : f32
    %29 = vector.broadcast %cst_12 : f32 to vector<2x64xf32>
    %30 = arith.addf %29, %28 : vector<2x64xf32>
    %31 = arith.divf %29, %30 : vector<2x64xf32>
    %32 = arith.mulf %23, %8 : vector<2x64xf32>
    %33 = arith.mulf %17, %25 : vector<2x64xf32>
    %34 = arith.addf %32, %33 : vector<2x64xf32>
    %35 = math.tanh %34 : vector<2x64xf32>
    %36 = arith.mulf %31, %35 : vector<2x64xf32>
    %37 = vector.extract_strided_slice %5 {offsets = [2, 0], sizes = [2, 256], strides = [1, 1]} : vector<16x256xf32> to vector<2x256xf32>
    %cst_13 = arith.constant dense<0.000000e+00> : vector<2x256xf32>
    %38 = tpu.matmul %36, %6, %cst_13 {dimension_numbers = #tpu.dot_dimension_numbers<[1], [0], [0], [1], [0, 0, 1, 1], [], []>} : vector<2x64xf32>, vector<64x256xf32>, vector<2x256xf32> -> vector<2x256xf32>
    %39 = arith.addf %37, %38 : vector<2x256xf32>
    %40 = vector.extract_strided_slice %39 {offsets = [0, 0], sizes = [2, 64], strides = [1, 1]} : vector<2x256xf32> to vector<2x64xf32>
    %41 = arith.negf %40 : vector<2x64xf32>
    %42 = math.exp %41 : vector<2x64xf32>
    %cst_14 = arith.constant 1.000000e+00 : f32
    %43 = vector.broadcast %cst_14 : f32 to vector<2x64xf32>
    %44 = arith.addf %43, %42 : vector<2x64xf32>
    %45 = arith.divf %43, %44 : vector<2x64xf32>
    %46 = vector.extract_strided_slice %39 {offsets = [0, 64], sizes = [2, 64], strides = [1, 1]} : vector<2x256xf32> to vector<2x64xf32>
    %47 = arith.negf %46 : vector<2x64xf32>
    %48 = math.exp %47 : vector<2x64xf32>
    %cst_15 = arith.constant 1.000000e+00 : f32
    %49 = vector.broadcast %cst_15 : f32 to vector<2x64xf32>
    %50 = arith.addf %49, %48 : vector<2x64xf32>
    %51 = arith.divf %49, %50 : vector<2x64xf32>
    %52 = vector.extract_strided_slice %39 {offsets = [0, 128], sizes = [2, 64], strides = [1, 1]} : vector<2x256xf32> to vector<2x64xf32>
    %53 = math.tanh %52 : vector<2x64xf32>
    %54 = vector.extract_strided_slice %39 {offsets = [0, 192], sizes = [2, 64], strides = [1, 1]} : vector<2x256xf32> to vector<2x64xf32>
    %55 = arith.negf %54 : vector<2x64xf32>
    %56 = math.exp %55 : vector<2x64xf32>
    %cst_16 = arith.constant 1.000000e+00 : f32
    %57 = vector.broadcast %cst_16 : f32 to vector<2x64xf32>
    %58 = arith.addf %57, %56 : vector<2x64xf32>
    %59 = arith.divf %57, %58 : vector<2x64xf32>
    %60 = arith.mulf %51, %34 : vector<2x64xf32>
    %61 = arith.mulf %45, %53 : vector<2x64xf32>
    %62 = arith.addf %60, %61 : vector<2x64xf32>
    %63 = math.tanh %62 : vector<2x64xf32>
    %64 = arith.mulf %59, %63 : vector<2x64xf32>
    %65 = vector.extract_strided_slice %5 {offsets = [4, 0], sizes = [2, 256], strides = [1, 1]} : vector<16x256xf32> to vector<2x256xf32>
    %cst_17 = arith.constant dense<0.000000e+00> : vector<2x256xf32>
    %66 = tpu.matmul %64, %6, %cst_17 {dimension_numbers = #tpu.dot_dimension_numbers<[1], [0], [0], [1], [0, 0, 1, 1], [], []>} : vector<2x64xf32>, vector<64x256xf32>, vector<2x256xf32> -> vector<2x256xf32>
    %67 = arith.addf %65, %66 : vector<2x256xf32>
    %68 = vector.extract_strided_slice %67 {offsets = [0, 0], sizes = [2, 64], strides = [1, 1]} : vector<2x256xf32> to vector<2x64xf32>
    %69 = arith.negf %68 : vector<2x64xf32>
    %70 = math.exp %69 : vector<2x64xf32>
    %cst_18 = arith.constant 1.000000e+00 : f32
    %71 = vector.broadcast %cst_18 : f32 to vector<2x64xf32>
    %72 = arith.addf %71, %70 : vector<2x64xf32>
    %73 = arith.divf %71, %72 : vector<2x64xf32>
    %74 = vector.extract_strided_slice %67 {offsets = [0, 64], sizes = [2, 64], strides = [1, 1]} : vector<2x256xf32> to vector<2x64xf32>
    %75 = arith.negf %74 : vector<2x64xf32>
    %76 = math.exp %75 : vector<2x64xf32>
    %cst_19 = arith.constant 1.000000e+00 : f32
    %77 = vector.broadcast %cst_19 : f32 to vector<2x64xf32>
    %78 = arith.addf %77, %76 : vector<2x64xf32>
    %79 = arith.divf %77, %78 : vector<2x64xf32>
    %80 = vector.extract_strided_slice %67 {offsets = [0, 128], sizes = [2, 64], strides = [1, 1]} : vector<2x256xf32> to vector<2x64xf32>
    %81 = math.tanh %80 : vector<2x64xf32>
    %82 = vector.extract_strided_slice %67 {offsets = [0, 192], sizes = [2, 64], strides = [1, 1]} : vector<2x256xf32> to vector<2x64xf32>
    %83 = arith.negf %82 : vector<2x64xf32>
    %84 = math.exp %83 : vector<2x64xf32>
    %cst_20 = arith.constant 1.000000e+00 : f32
    %85 = vector.broadcast %cst_20 : f32 to vector<2x64xf32>
    %86 = arith.addf %85, %84 : vector<2x64xf32>
    %87 = arith.divf %85, %86 : vector<2x64xf32>
    %88 = arith.mulf %79, %62 : vector<2x64xf32>
    %89 = arith.mulf %73, %81 : vector<2x64xf32>
    %90 = arith.addf %88, %89 : vector<2x64xf32>
    %91 = math.tanh %90 : vector<2x64xf32>
    %92 = arith.mulf %87, %91 : vector<2x64xf32>
    %93 = vector.extract_strided_slice %5 {offsets = [6, 0], sizes = [2, 256], strides = [1, 1]} : vector<16x256xf32> to vector<2x256xf32>
    %cst_21 = arith.constant dense<0.000000e+00> : vector<2x256xf32>
    %94 = tpu.matmul %92, %6, %cst_21 {dimension_numbers = #tpu.dot_dimension_numbers<[1], [0], [0], [1], [0, 0, 1, 1], [], []>} : vector<2x64xf32>, vector<64x256xf32>, vector<2x256xf32> -> vector<2x256xf32>
    %95 = arith.addf %93, %94 : vector<2x256xf32>
    %96 = vector.extract_strided_slice %95 {offsets = [0, 0], sizes = [2, 64], strides = [1, 1]} : vector<2x256xf32> to vector<2x64xf32>
    %97 = arith.negf %96 : vector<2x64xf32>
    %98 = math.exp %97 : vector<2x64xf32>
    %cst_22 = arith.constant 1.000000e+00 : f32
    %99 = vector.broadcast %cst_22 : f32 to vector<2x64xf32>
    %100 = arith.addf %99, %98 : vector<2x64xf32>
    %101 = arith.divf %99, %100 : vector<2x64xf32>
    %102 = vector.extract_strided_slice %95 {offsets = [0, 64], sizes = [2, 64], strides = [1, 1]} : vector<2x256xf32> to vector<2x64xf32>
    %103 = arith.negf %102 : vector<2x64xf32>
    %104 = math.exp %103 : vector<2x64xf32>
    %cst_23 = arith.constant 1.000000e+00 : f32
    %105 = vector.broadcast %cst_23 : f32 to vector<2x64xf32>
    %106 = arith.addf %105, %104 : vector<2x64xf32>
    %107 = arith.divf %105, %106 : vector<2x64xf32>
    %108 = vector.extract_strided_slice %95 {offsets = [0, 128], sizes = [2, 64], strides = [1, 1]} : vector<2x256xf32> to vector<2x64xf32>
    %109 = math.tanh %108 : vector<2x64xf32>
    %110 = vector.extract_strided_slice %95 {offsets = [0, 192], sizes = [2, 64], strides = [1, 1]} : vector<2x256xf32> to vector<2x64xf32>
    %111 = arith.negf %110 : vector<2x64xf32>
    %112 = math.exp %111 : vector<2x64xf32>
    %cst_24 = arith.constant 1.000000e+00 : f32
    %113 = vector.broadcast %cst_24 : f32 to vector<2x64xf32>
    %114 = arith.addf %113, %112 : vector<2x64xf32>
    %115 = arith.divf %113, %114 : vector<2x64xf32>
    %116 = arith.mulf %107, %90 : vector<2x64xf32>
    %117 = arith.mulf %101, %109 : vector<2x64xf32>
    %118 = arith.addf %116, %117 : vector<2x64xf32>
    %119 = math.tanh %118 : vector<2x64xf32>
    %120 = arith.mulf %115, %119 : vector<2x64xf32>
    %121 = vector.extract_strided_slice %5 {offsets = [8, 0], sizes = [2, 256], strides = [1, 1]} : vector<16x256xf32> to vector<2x256xf32>
    %cst_25 = arith.constant dense<0.000000e+00> : vector<2x256xf32>
    %122 = tpu.matmul %120, %6, %cst_25 {dimension_numbers = #tpu.dot_dimension_numbers<[1], [0], [0], [1], [0, 0, 1, 1], [], []>} : vector<2x64xf32>, vector<64x256xf32>, vector<2x256xf32> -> vector<2x256xf32>
    %123 = arith.addf %121, %122 : vector<2x256xf32>
    %124 = vector.extract_strided_slice %123 {offsets = [0, 0], sizes = [2, 64], strides = [1, 1]} : vector<2x256xf32> to vector<2x64xf32>
    %125 = arith.negf %124 : vector<2x64xf32>
    %126 = math.exp %125 : vector<2x64xf32>
    %cst_26 = arith.constant 1.000000e+00 : f32
    %127 = vector.broadcast %cst_26 : f32 to vector<2x64xf32>
    %128 = arith.addf %127, %126 : vector<2x64xf32>
    %129 = arith.divf %127, %128 : vector<2x64xf32>
    %130 = vector.extract_strided_slice %123 {offsets = [0, 64], sizes = [2, 64], strides = [1, 1]} : vector<2x256xf32> to vector<2x64xf32>
    %131 = arith.negf %130 : vector<2x64xf32>
    %132 = math.exp %131 : vector<2x64xf32>
    %cst_27 = arith.constant 1.000000e+00 : f32
    %133 = vector.broadcast %cst_27 : f32 to vector<2x64xf32>
    %134 = arith.addf %133, %132 : vector<2x64xf32>
    %135 = arith.divf %133, %134 : vector<2x64xf32>
    %136 = vector.extract_strided_slice %123 {offsets = [0, 128], sizes = [2, 64], strides = [1, 1]} : vector<2x256xf32> to vector<2x64xf32>
    %137 = math.tanh %136 : vector<2x64xf32>
    %138 = vector.extract_strided_slice %123 {offsets = [0, 192], sizes = [2, 64], strides = [1, 1]} : vector<2x256xf32> to vector<2x64xf32>
    %139 = arith.negf %138 : vector<2x64xf32>
    %140 = math.exp %139 : vector<2x64xf32>
    %cst_28 = arith.constant 1.000000e+00 : f32
    %141 = vector.broadcast %cst_28 : f32 to vector<2x64xf32>
    %142 = arith.addf %141, %140 : vector<2x64xf32>
    %143 = arith.divf %141, %142 : vector<2x64xf32>
    %144 = arith.mulf %135, %118 : vector<2x64xf32>
    %145 = arith.mulf %129, %137 : vector<2x64xf32>
    %146 = arith.addf %144, %145 : vector<2x64xf32>
    %147 = math.tanh %146 : vector<2x64xf32>
    %148 = arith.mulf %143, %147 : vector<2x64xf32>
    %149 = vector.extract_strided_slice %5 {offsets = [10, 0], sizes = [2, 256], strides = [1, 1]} : vector<16x256xf32> to vector<2x256xf32>
    %cst_29 = arith.constant dense<0.000000e+00> : vector<2x256xf32>
    %150 = tpu.matmul %148, %6, %cst_29 {dimension_numbers = #tpu.dot_dimension_numbers<[1], [0], [0], [1], [0, 0, 1, 1], [], []>} : vector<2x64xf32>, vector<64x256xf32>, vector<2x256xf32> -> vector<2x256xf32>
    %151 = arith.addf %149, %150 : vector<2x256xf32>
    %152 = vector.extract_strided_slice %151 {offsets = [0, 0], sizes = [2, 64], strides = [1, 1]} : vector<2x256xf32> to vector<2x64xf32>
    %153 = arith.negf %152 : vector<2x64xf32>
    %154 = math.exp %153 : vector<2x64xf32>
    %cst_30 = arith.constant 1.000000e+00 : f32
    %155 = vector.broadcast %cst_30 : f32 to vector<2x64xf32>
    %156 = arith.addf %155, %154 : vector<2x64xf32>
    %157 = arith.divf %155, %156 : vector<2x64xf32>
    %158 = vector.extract_strided_slice %151 {offsets = [0, 64], sizes = [2, 64], strides = [1, 1]} : vector<2x256xf32> to vector<2x64xf32>
    %159 = arith.negf %158 : vector<2x64xf32>
    %160 = math.exp %159 : vector<2x64xf32>
    %cst_31 = arith.constant 1.000000e+00 : f32
    %161 = vector.broadcast %cst_31 : f32 to vector<2x64xf32>
    %162 = arith.addf %161, %160 : vector<2x64xf32>
    %163 = arith.divf %161, %162 : vector<2x64xf32>
    %164 = vector.extract_strided_slice %151 {offsets = [0, 128], sizes = [2, 64], strides = [1, 1]} : vector<2x256xf32> to vector<2x64xf32>
    %165 = math.tanh %164 : vector<2x64xf32>
    %166 = vector.extract_strided_slice %151 {offsets = [0, 192], sizes = [2, 64], strides = [1, 1]} : vector<2x256xf32> to vector<2x64xf32>
    %167 = arith.negf %166 : vector<2x64xf32>
    %168 = math.exp %167 : vector<2x64xf32>
    %cst_32 = arith.constant 1.000000e+00 : f32
    %169 = vector.broadcast %cst_32 : f32 to vector<2x64xf32>
    %170 = arith.addf %169, %168 : vector<2x64xf32>
    %171 = arith.divf %169, %170 : vector<2x64xf32>
    %172 = arith.mulf %163, %146 : vector<2x64xf32>
    %173 = arith.mulf %157, %165 : vector<2x64xf32>
    %174 = arith.addf %172, %173 : vector<2x64xf32>
    %175 = math.tanh %174 : vector<2x64xf32>
    %176 = arith.mulf %171, %175 : vector<2x64xf32>
    %177 = vector.extract_strided_slice %5 {offsets = [12, 0], sizes = [2, 256], strides = [1, 1]} : vector<16x256xf32> to vector<2x256xf32>
    %cst_33 = arith.constant dense<0.000000e+00> : vector<2x256xf32>
    %178 = tpu.matmul %176, %6, %cst_33 {dimension_numbers = #tpu.dot_dimension_numbers<[1], [0], [0], [1], [0, 0, 1, 1], [], []>} : vector<2x64xf32>, vector<64x256xf32>, vector<2x256xf32> -> vector<2x256xf32>
    %179 = arith.addf %177, %178 : vector<2x256xf32>
    %180 = vector.extract_strided_slice %179 {offsets = [0, 0], sizes = [2, 64], strides = [1, 1]} : vector<2x256xf32> to vector<2x64xf32>
    %181 = arith.negf %180 : vector<2x64xf32>
    %182 = math.exp %181 : vector<2x64xf32>
    %cst_34 = arith.constant 1.000000e+00 : f32
    %183 = vector.broadcast %cst_34 : f32 to vector<2x64xf32>
    %184 = arith.addf %183, %182 : vector<2x64xf32>
    %185 = arith.divf %183, %184 : vector<2x64xf32>
    %186 = vector.extract_strided_slice %179 {offsets = [0, 64], sizes = [2, 64], strides = [1, 1]} : vector<2x256xf32> to vector<2x64xf32>
    %187 = arith.negf %186 : vector<2x64xf32>
    %188 = math.exp %187 : vector<2x64xf32>
    %cst_35 = arith.constant 1.000000e+00 : f32
    %189 = vector.broadcast %cst_35 : f32 to vector<2x64xf32>
    %190 = arith.addf %189, %188 : vector<2x64xf32>
    %191 = arith.divf %189, %190 : vector<2x64xf32>
    %192 = vector.extract_strided_slice %179 {offsets = [0, 128], sizes = [2, 64], strides = [1, 1]} : vector<2x256xf32> to vector<2x64xf32>
    %193 = math.tanh %192 : vector<2x64xf32>
    %194 = vector.extract_strided_slice %179 {offsets = [0, 192], sizes = [2, 64], strides = [1, 1]} : vector<2x256xf32> to vector<2x64xf32>
    %195 = arith.negf %194 : vector<2x64xf32>
    %196 = math.exp %195 : vector<2x64xf32>
    %cst_36 = arith.constant 1.000000e+00 : f32
    %197 = vector.broadcast %cst_36 : f32 to vector<2x64xf32>
    %198 = arith.addf %197, %196 : vector<2x64xf32>
    %199 = arith.divf %197, %198 : vector<2x64xf32>
    %200 = arith.mulf %191, %174 : vector<2x64xf32>
    %201 = arith.mulf %185, %193 : vector<2x64xf32>
    %202 = arith.addf %200, %201 : vector<2x64xf32>
    %203 = math.tanh %202 : vector<2x64xf32>
    %204 = arith.mulf %199, %203 : vector<2x64xf32>
    %205 = vector.extract_strided_slice %5 {offsets = [14, 0], sizes = [2, 256], strides = [1, 1]} : vector<16x256xf32> to vector<2x256xf32>
    %cst_37 = arith.constant dense<0.000000e+00> : vector<2x256xf32>
    %206 = tpu.matmul %204, %6, %cst_37 {dimension_numbers = #tpu.dot_dimension_numbers<[1], [0], [0], [1], [0, 0, 1, 1], [], []>} : vector<2x64xf32>, vector<64x256xf32>, vector<2x256xf32> -> vector<2x256xf32>
    %207 = arith.addf %205, %206 : vector<2x256xf32>
    %208 = vector.extract_strided_slice %207 {offsets = [0, 0], sizes = [2, 64], strides = [1, 1]} : vector<2x256xf32> to vector<2x64xf32>
    %209 = arith.negf %208 : vector<2x64xf32>
    %210 = math.exp %209 : vector<2x64xf32>
    %cst_38 = arith.constant 1.000000e+00 : f32
    %211 = vector.broadcast %cst_38 : f32 to vector<2x64xf32>
    %212 = arith.addf %211, %210 : vector<2x64xf32>
    %213 = arith.divf %211, %212 : vector<2x64xf32>
    %214 = vector.extract_strided_slice %207 {offsets = [0, 64], sizes = [2, 64], strides = [1, 1]} : vector<2x256xf32> to vector<2x64xf32>
    %215 = arith.negf %214 : vector<2x64xf32>
    %216 = math.exp %215 : vector<2x64xf32>
    %cst_39 = arith.constant 1.000000e+00 : f32
    %217 = vector.broadcast %cst_39 : f32 to vector<2x64xf32>
    %218 = arith.addf %217, %216 : vector<2x64xf32>
    %219 = arith.divf %217, %218 : vector<2x64xf32>
    %220 = vector.extract_strided_slice %207 {offsets = [0, 128], sizes = [2, 64], strides = [1, 1]} : vector<2x256xf32> to vector<2x64xf32>
    %221 = math.tanh %220 : vector<2x64xf32>
    %222 = vector.extract_strided_slice %207 {offsets = [0, 192], sizes = [2, 64], strides = [1, 1]} : vector<2x256xf32> to vector<2x64xf32>
    %223 = arith.negf %222 : vector<2x64xf32>
    %224 = math.exp %223 : vector<2x64xf32>
    %cst_40 = arith.constant 1.000000e+00 : f32
    %225 = vector.broadcast %cst_40 : f32 to vector<2x64xf32>
    %226 = arith.addf %225, %224 : vector<2x64xf32>
    %227 = arith.divf %225, %226 : vector<2x64xf32>
    %228 = arith.mulf %219, %202 : vector<2x64xf32>
    %229 = arith.mulf %213, %221 : vector<2x64xf32>
    %230 = arith.addf %228, %229 : vector<2x64xf32>
    %231 = math.tanh %230 : vector<2x64xf32>
    %232 = arith.mulf %227, %231 : vector<2x64xf32>
    %c0_41 = arith.constant 0 : index
    %c0_42 = arith.constant 0 : index
    %233 = vector.load %arg4[%c0_41, %c0_42] : memref<64x32xf32, #tpu.memory_space<vmem>>, vector<64x32xf32>
    %cst_43 = arith.constant dense<0.000000e+00> : vector<2x32xf32>
    %234 = tpu.matmul %232, %233, %cst_43 {dimension_numbers = #tpu.dot_dimension_numbers<[1], [0], [0], [1], [0, 0, 1, 1], [], []>} : vector<2x64xf32>, vector<64x32xf32>, vector<2x32xf32> -> vector<2x32xf32>
    %c0_44 = arith.constant 0 : index
    %c0_45 = arith.constant 0 : index
    %235 = vector.load %arg5[%c0_44, %c0_45] : memref<1x32xf32, #tpu.memory_space<vmem>>, vector<1x32xf32>
    %236 = vector.broadcast %235 : vector<1x32xf32> to vector<2x32xf32>
    %237 = arith.addf %234, %236 : vector<2x32xf32>
    %238 = vector.extract_strided_slice %237 {offsets = [0, 0], sizes = [2, 16], strides = [1, 1]} : vector<2x32xf32> to vector<2x16xf32>
    %239 = vector.extract_strided_slice %237 {offsets = [0, 16], sizes = [2, 16], strides = [1, 1]} : vector<2x32xf32> to vector<2x16xf32>
    %cst_46 = arith.constant 5.000000e-01 : f32
    %240 = vector.broadcast %cst_46 : f32 to vector<2x16xf32>
    %241 = arith.mulf %239, %240 : vector<2x16xf32>
    %242 = math.exp %241 : vector<2x16xf32>
    %c0_47 = arith.constant 0 : index
    %c0_48 = arith.constant 0 : index
    %243 = vector.load %arg6[%c0_47, %c0_48] : memref<2x16xf32, #tpu.memory_space<vmem>>, vector<2x16xf32>
    %244 = arith.mulf %242, %243 : vector<2x16xf32>
    %245 = arith.addf %238, %244 : vector<2x16xf32>
    %246 = tpu.concatenate %245, %238, %242 in 1 : vector<2x16xf32>, vector<2x16xf32>, vector<2x16xf32> -> vector<2x48xf32>
    %c0_49 = arith.constant 0 : index
    %c0_50 = arith.constant 0 : index
    %247 = vector.load %arg7[%c0_49, %c0_50] : memref<2x48xf32, #tpu.memory_space<vmem>>, vector<2x48xf32>
    tpu.vector_store %arg7[%c0_49, %c0_50], %246 {strides = array<i32>} : memref<2x48xf32, #tpu.memory_space<vmem>>, vector<2x48xf32>,
    return
  }
}

</mosaic_0001>

<llo_original>
// kernel: tpu_custom_call.1
$region0: #{tpu_custom_call.1}
  #allocation0 [shape = 'u32[]', space=smem, size = 0x4, offset = 0x4, fixed_abs, tag = 'smem constant byte address 0x4 - core index']
  #allocation1 [shape = 'u32[144,128]{1,0:T(1,128)}', space=vmem, size = 0x12000, scoped, tag = 'internal scratch']
  %s0 = inlined_call_operand.vmem [shape: f32[16,10], index: 0, kind: input, shape index: {}]
  %s1 = inlined_call_operand.vmem [shape: f32[10,256], index: 1, kind: input, shape index: {}]
  %s2 = inlined_call_operand.vmem [shape: f32[1,256], index: 2, kind: input, shape index: {}]
  %s3 = inlined_call_operand.hbm [shape: f32[64,256], index: 3, kind: input, shape index: {}]
  %s4 = inlined_call_operand.vmem [shape: f32[64,32], index: 4, kind: input, shape index: {}]
  %s5 = inlined_call_operand.vmem [shape: f32[1,32], index: 5, kind: input, shape index: {}]
  %s6 = inlined_call_operand.vmem [shape: f32[2,16], index: 6, kind: input, shape index: {}]
  %s7 = inlined_call_operand.hbm [shape: f32[2,48], index: 7, kind: output, shape index: {}]
  %s8 = sld [smem:[#allocation0]]
  $region42: #{tpu_custom_call.1} parent=0
    _
  %s10 = ssub.s32 1, %s8
  %s11 = scalar_select 0, %s10, %s8
  $region1: #{tpu_custom_call.1} parent=0
    #allocation2 [shape = 'u8[65536]{0}', space=vmem, size = 0x10000, scoped, tag = 'input window, operand 3, single buffered']
    #allocation3 [shape = 's32[1]{0}', space=sflag, size = 0x4, scoped, tag = 'scoped memory for tpu_custom_call.1']
    #allocation4 [shape = 's32[1]{0}', space=sflag, size = 0x4, scoped, tag = 'scoped memory for tpu_custom_call.1']
    #allocation5 [shape = 'u8[1024]{0}', space=vmem, size = 0x400, scoped, tag = 'output window, operand 0, single buffered']
    %12 = vsyncpa [#allocation3], 0
    %13 = vsyncpa [#allocation4], 0
    // Predicated region
    $region2: #{tpu_custom_call.1} parent=1 // pred_check
      _
    $region3: #{tpu_custom_call.1} parent=1 // pred_check_branch
      %15 = sbr.rel (0) target = $region5
    $region4: #{tpu_custom_call.1} parent=1 // pred_region
      _
    $region5: #{tpu_custom_call.1} parent=1 // pred_fallthru
      _
    // Predicated region
    $region6: #{tpu_custom_call.1} parent=1 // pred_check
      _
    $region7: #{tpu_custom_call.1} parent=1 // pred_check_branch
      %17 = sbr.rel (0) target = $region9
    $region8: #{tpu_custom_call.1} parent=1 // pred_region
      _
    $region9: #{tpu_custom_call.1} parent=1 // pred_fallthru
      _
    // Predicated region
    $region10: #{tpu_custom_call.1} parent=1 // pred_check
      _
    $region11: #{tpu_custom_call.1} parent=1 // pred_check_branch
      %19 = sbr.rel (0) target = $region13
    $region12: #{tpu_custom_call.1} parent=1 // pred_region
      _
    $region13: #{tpu_custom_call.1} parent=1 // pred_fallthru
      _
    // Predicated region
    $region14: #{tpu_custom_call.1} parent=1 // pred_check
      _
    $region15: #{tpu_custom_call.1} parent=1 // pred_check_branch
      %21 = sbr.rel (0) target = $region17
    $region16: #{tpu_custom_call.1} parent=1 // pred_region
      %s23 = ssub.s32 2048, 2048
      %24 = vsyncadd [#allocation3], %s23
      %s25 = sshll.u32 [#allocation2], 4
      %s26 = int_to_ptr.vmem [resolvable:$true] %s25
      %31 = dma.hbm_to_vmem [thread:$0]  %s3, 2048, %s26, [#allocation3], 256, 256, 16
    $region17: #{tpu_custom_call.1} parent=1 // pred_fallthru
      _
    // Predicated region
    $region18: #{tpu_custom_call.1} parent=1 // pred_check
      _
    $region19: #{tpu_custom_call.1} parent=1 // pred_check_branch
      %33 = sbr.rel (0) target = $region21
    $region20: #{tpu_custom_call.1} parent=1 // pred_region
      _
    $region21: #{tpu_custom_call.1} parent=1 // pred_fallthru
      _
    // Predicated region
    $region22: #{tpu_custom_call.1} parent=1 // pred_check
      _
    $region23: #{tpu_custom_call.1} parent=1 // pred_check_branch
      %35 = sbr.rel (0) target = $region25
    $region24: #{tpu_custom_call.1} parent=1 // pred_region
      _
    $region25: #{tpu_custom_call.1} parent=1 // pred_fallthru
      _
    // Predicated region
    $region26: #{tpu_custom_call.1} parent=1 // pred_check
      _
    $region27: #{tpu_custom_call.1} parent=1 // pred_check_branch
      %37 = sbr.rel (0) target = $region29
    $region28: #{tpu_custom_call.1} parent=1 // pred_region
      _
    $region29: #{tpu_custom_call.1} parent=1 // pred_fallthru
      _
    // Predicated region
    $region30: #{tpu_custom_call.1} parent=1 // pred_check
      _
    $region31: #{tpu_custom_call.1} parent=1 // pred_check_branch
      %39 = sbr.rel (0) target = $region33
    $region32: #{tpu_custom_call.1} parent=1 // pred_region
      %40 = dma.done [#allocation3], 2048
    $region33: #{tpu_custom_call.1} parent=1 // pred_fallthru
      _
    %v41 = vld [vmem:[%s0] sm:$0xff]
    %v42 = vld [vmem:[%s0 + $0x8] sm:$0xff]
    %v43 = vld [vmem:[%s1] sm:$0xff]
    %v44 = vld [vmem:[%s1 + $0x8] sm:$0xff]
    %v45 = vld [vmem:[%s1 + $0x10] sm:$0x3]
    %v46 = vld [vmem:[%s1 + $0x18] sm:$0x3]
    %v47 = vld [vmem:[%s2] sm:$0x3]
    %v49 = vlaneseq
    %v50 = vshrl.u32 %v49, 7
    %v51 = vsub.s32 0, %v50
    %v52 = vrot.slane %v47, %v51
    %v53 = vlaneseq
    %v54 = vshrl.u32 %v53, 7
    %v55 = vsub.s32 1, %v54
    %v56 = vrot.slane %v47, %v55
    %vm59 = vcmask 80896
    %v61 = vsel %vm59, %v41, 0
    %v64 = vsel %vm59, %v42, 0
    %vm66 = vcmask 1041408
    %v68 = vsel %vm66, %v45, 0
    %v71 = vsel %vm66, %v46, 0
    %73 = vmatprep.subr.mxu0 %v44
    %74 = vmatpush1.msra.mxu0 %v43
    %75 = vmatprep.subr.mxu0 %v71
    %76 = vmatpush1.msra.mxu0 %v68
    %77 = vmatprep.subr.mxu0 0.0
    %78 = vmatpush1.msra.mxu0 0.0
    %79 = vmatprep.subr.mxu0 0.0
    %80 = vmatpush1.msra.mxu0 0.0
    %81 = vmatprep.subr.mxu0 0.0
    %82 = vmatpush1.msra.mxu0 0.0
    %83 = vmatprep.subr.mxu0 0.0
    %84 = vmatpush1.msra.mxu0 0.0
    %85 = vmatprep.subr.mxu0 0.0
    %86 = vmatpush1.msra.mxu0 0.0
    %87 = vmatprep.subr.mxu0 0.0
    %88 = vmatpush1.msra.mxu0 0.0
    %89 = vmatprep.subr.mxu0 0.0
    %90 = vmatpush1.msra.mxu0 0.0
    %91 = vmatprep.subr.mxu0 0.0
    %92 = vmatpush1.msra.mxu0 0.0
    %93 = vmatprep.subr.mxu0 0.0
    %94 = vmatpush1.msra.mxu0 0.0
    %95 = vmatprep.subr.mxu0 0.0
    %96 = vmatpush1.msra.mxu0 0.0
    %97 = vmatprep.subr.mxu0 0.0
    %98 = vmatpush1.msra.mxu0 0.0
    %99 = vmatprep.subr.mxu0 0.0
    %100 = vmatpush1.msra.mxu0 0.0
    %101 = vmatprep.subr.mxu0 0.0
    %102 = vmatpush1.msra.mxu0 0.0
    %103 = vmatprep.subr.mxu0 0.0
    %104 = vmatpush1.msra.mxu0 0.0
    %105 = vmatprep.subr.mxu0 0.0
    %106 = vmatpush1.msra.mxu0 0.0
    %107 = vmatprep.subr.mxu0 0.0
    %108 = vmatpush1.msra.mxu0 0.0
    %109 = vmatprep.subr.mxu0 0.0
    %110 = vmatpush1.msra.mxu0 0.0
    %111 = vmatprep.subr.mxu0 0.0
    %112 = vmatpush1.msra.mxu0 0.0
    %113 = vmatprep.subr.mxu0 0.0
    %114 = vmatpush1.msra.mxu0 0.0
    %115 = vmatprep.subr.mxu0 0.0
    %116 = vmatpush1.msra.mxu0 0.0
    %117 = vmatprep.subr.mxu0 0.0
    %118 = vmatpush1.msra.mxu0 0.0
    %119 = vmatprep.subr.mxu0 0.0
    %120 = vmatpush1.msra.mxu0 0.0
    %121 = vmatprep.subr.mxu0 0.0
    %122 = vmatpush1.msra.mxu0 0.0
    %123 = vmatprep.subr.mxu0 0.0
    %124 = vmatpush1.msra.mxu0 0.0
    %125 = vmatprep.subr.mxu0 0.0
    %126 = vmatpush1.msra.mxu0 0.0
    %127 = vmatprep.subr.mxu0 0.0
    %128 = vmatpush1.msra.mxu0 0.0
    %129 = vmatprep.subr.mxu0 0.0
    %130 = vmatpush1.msra.mxu0 0.0
    %131 = vmatprep.subr.mxu0 0.0
    %132 = vmatpush1.msra.mxu0 0.0
    %133 = vmatprep.subr.mxu0 0.0
    %134 = vmatpush1.msra.mxu0 0.0
    %135 = vmatprep.subr.mxu0 0.0
    %136 = vmatpush1.msra.mxu0 0.0
    %137 = vmatprep.mubr.f32.mxu0 0.0
    %138 = vmatmul.mubr.f32.gmra.mrb[0].mxu0 %v61
    %v139 = vpop.f32.mrb[0].mxu0
    %v140 = vadd.f32 %v52, %v139
    %v141 = vpop.f32.mrb[0].mxu0
    %v142 = vadd.f32 %v56, %v141
    %143 = vmatprep.mubr.f32.mxu0 0.0
    %144 = vmatmul.mubr.f32.gmra.mrb[0].mxu0 %v64
    %v145 = vpop.f32.mrb[0].mxu0
    %v146 = vadd.f32 %v52, %v145
    %v147 = vpop.f32.mrb[0].mxu0
    %v148 = vadd.f32 %v56, %v147
    %149 = vdwg.mxu0
    %v150 = vld [vmem:[#allocation2] sm:$0xff]
    %v151 = vld [vmem:[#allocation2 + $0x8] sm:$0xff]
    %v152 = vld [vmem:[#allocation2 + $0x10] sm:$0xff]
    %v153 = vld [vmem:[#allocation2 + $0x18] sm:$0xff]
    %v154 = vld [vmem:[#allocation2 + $0x20] sm:$0xff]
    %v155 = vld [vmem:[#allocation2 + $0x28] sm:$0xff]
    %v156 = vld [vmem:[#allocation2 + $0x30] sm:$0xff]
    %v157 = vld [vmem:[#allocation2 + $0x38] sm:$0xff]
    %v158 = vld [vmem:[#allocation2 + $0x40] sm:$0xff]
    %v159 = vld [vmem:[#allocation2 + $0x48] sm:$0xff]
    %v160 = vld [vmem:[#allocation2 + $0x50] sm:$0xff]
    %v161 = vld [vmem:[#allocation2 + $0x58] sm:$0xff]
    %v162 = vld [vmem:[#allocation2 + $0x60] sm:$0xff]
    %v163 = vld [vmem:[#allocation2 + $0x68] sm:$0xff]
    %v164 = vld [vmem:[#allocation2 + $0x70] sm:$0xff]
    %v165 = vld [vmem:[#allocation2 + $0x78] sm:$0xff]
    %vm166 = vcmask 523264
    %v168 = vsel %vm166, 0.0, 0
    %170 = vmatprep.subr.mxu0 %v151
    %171 = vmatpush1.msra.mxu0 %v150
    %172 = vmatprep.subr.mxu0 %v153
    %173 = vmatpush1.msra.mxu0 %v152
    %174 = vmatprep.subr.mxu0 %v155
    %175 = vmatpush1.msra.mxu0 %v154
    %176 = vmatprep.subr.mxu0 %v157
    %177 = vmatpush1.msra.mxu0 %v156
    %178 = vmatprep.subr.mxu0 %v159
    %179 = vmatpush1.msra.mxu0 %v158
    %180 = vmatprep.subr.mxu0 %v161
    %181 = vmatpush1.msra.mxu0 %v160
    %182 = vmatprep.subr.mxu0 %v163
    %183 = vmatpush1.msra.mxu0 %v162
    %184 = vmatprep.subr.mxu0 %v165
    %185 = vmatpush1.msra.mxu0 %v164
    %186 = vmatprep.subr.mxu0 0.0
    %187 = vmatpush1.msra.mxu0 0.0
    %188 = vmatprep.subr.mxu0 0.0
    %189 = vmatpush1.msra.mxu0 0.0
    %190 = vmatprep.subr.mxu0 0.0
    %191 = vmatpush1.msra.mxu0 0.0
    %192 = vmatprep.subr.mxu0 0.0
    %193 = vmatpush1.msra.mxu0 0.0
    %194 = vmatprep.subr.mxu0 0.0
    %195 = vmatpush1.msra.mxu0 0.0
    %196 = vmatprep.subr.mxu0 0.0
    %197 = vmatpush1.msra.mxu0 0.0
    %198 = vmatprep.subr.mxu0 0.0
    %199 = vmatpush1.msra.mxu0 0.0
    %200 = vmatprep.subr.mxu0 0.0
    %201 = vmatpush1.msra.mxu0 0.0
    %202 = vmatprep.subr.mxu0 0.0
    %203 = vmatpush1.msra.mxu0 0.0
    %204 = vmatprep.subr.mxu0 0.0
    %205 = vmatpush1.msra.mxu0 0.0
    %206 = vmatprep.subr.mxu0 0.0
    %207 = vmatpush1.msra.mxu0 0.0
    %208 = vmatprep.subr.mxu0 0.0
    %209 = vmatpush1.msra.mxu0 0.0
    %210 = vmatprep.subr.mxu0 0.0
    %211 = vmatpush1.msra.mxu0 0.0
    %212 = vmatprep.subr.mxu0 0.0
    %213 = vmatpush1.msra.mxu0 0.0
    %214 = vmatprep.subr.mxu0 0.0
    %215 = vmatpush1.msra.mxu0 0.0
    %216 = vmatprep.subr.mxu0 0.0
    %217 = vmatpush1.msra.mxu0 0.0
    %218 = vmatprep.subr.mxu0 0.0
    %219 = vmatpush1.msra.mxu0 0.0
    %220 = vmatprep.subr.mxu0 0.0
    %221 = vmatpush1.msra.mxu0 0.0
    %222 = vmatprep.subr.mxu0 0.0
    %223 = vmatpush1.msra.mxu0 0.0
    %224 = vmatprep.subr.mxu0 0.0
    %225 = vmatpush1.msra.mxu0 0.0
    %226 = vmatprep.subr.mxu0 0.0
    %227 = vmatpush1.msra.mxu0 0.0
    %228 = vmatprep.subr.mxu0 0.0
    %229 = vmatpush1.msra.mxu0 0.0
    %230 = vmatprep.subr.mxu0 0.0
    %231 = vmatpush1.msra.mxu0 0.0
    %232 = vmatprep.subr.mxu0 0.0
    %233 = vmatpush1.msra.mxu0 0.0
    %234 = vmatprep.mubr.f32.mxu0 0.0
    %235 = vmatmul.mubr.f32.gmra.mrb[0].mxu0 %v168
    %v236 = vpop.f32.mrb[0].mxu0
    %v237 = vadd.f32 0.0, %v236
    %v238 = vpop.f32.mrb[0].mxu0
    %v239 = vadd.f32 0.0, %v238
    %240 = vdwg.mxu0
    %v241 = vadd.f32 %v140, %v237
    %v242 = vadd.f32 %v142, %v239
    %v243 = vxor.u32 %v241, 2147483648
    %v244 = vmul.f32 %v243, 1.442695
    %v245 = vpow.pop %v244
    %v246 = vadd.f32 %v245, 1.0
    %v247 = vrcp.pop %v246
    %v248 = vmul.f32 1.0, %v247
    %v249 = vtanh.pop %v242
    %v250 = vxor.u32 %v242, 2147483648
    %v251 = vmul.f32 %v250, 1.442695
    %v252 = vpow.pop %v251
    %v253 = vadd.f32 %v252, 1.0
    %v254 = vrcp.pop %v253
    %v255 = vmul.f32 1.0, %v254
    %v256 = vmul.f32 %v248, 0.0
    %v257 = vmul.f32 %v248, %v249
    %259 = vrot.lane.b32.xlu0 %v257, 64
    %v260 = vpop.permute.xlu0 %259
    %v262 = vadd.f32 %v256, %v260
    %v263 = vtanh.pop %v262
    %v264 = vmul.f32 %v255, %v263
    %266 = vrot.lane.b32.xlu0 %v264, 64
    %v267 = vpop.permute.xlu0 %266
    %v268 = vsel %vm166, %v267, 0
    %270 = vmatprep.subr.mxu0 %v151
    %271 = vmatpush1.msra.mxu0 %v150
    %272 = vmatprep.subr.mxu0 %v153
    %273 = vmatpush1.msra.mxu0 %v152
    %274 = vmatprep.subr.mxu0 %v155
    %275 = vmatpush1.msra.mxu0 %v154
    %276 = vmatprep.subr.mxu0 %v157
    %277 = vmatpush1.msra.mxu0 %v156
    %278 = vmatprep.subr.mxu0 %v159
    %279 = vmatpush1.msra.mxu0 %v158
    %280 = vmatprep.subr.mxu0 %v161
    %281 = vmatpush1.msra.mxu0 %v160
    %282 = vmatprep.subr.mxu0 %v163
    %283 = vmatpush1.msra.mxu0 %v162
    %284 = vmatprep.subr.mxu0 %v165
    %285 = vmatpush1.msra.mxu0 %v164
    %286 = vmatprep.subr.mxu0 0.0
    %287 = vmatpush1.msra.mxu0 0.0
    %288 = vmatprep.subr.mxu0 0.0
    %289 = vmatpush1.msra.mxu0 0.0
    %290 = vmatprep.subr.mxu0 0.0
    %291 = vmatpush1.msra.mxu0 0.0
    %292 = vmatprep.subr.mxu0 0.0
    %293 = vmatpush1.msra.mxu0 0.0
    %294 = vmatprep.subr.mxu0 0.0
    %295 = vmatpush1.msra.mxu0 0.0
    %296 = vmatprep.subr.mxu0 0.0
    %297 = vmatpush1.msra.mxu0 0.0
    %298 = vmatprep.subr.mxu0 0.0
    %299 = vmatpush1.msra.mxu0 0.0
    %300 = vmatprep.subr.mxu0 0.0
    %301 = vmatpush1.msra.mxu0 0.0
    %302 = vmatprep.subr.mxu0 0.0
    %303 = vmatpush1.msra.mxu0 0.0
    %304 = vmatprep.subr.mxu0 0.0
    %305 = vmatpush1.msra.mxu0 0.0
    %306 = vmatprep.subr.mxu0 0.0
    %307 = vmatpush1.msra.mxu0 0.0
    %308 = vmatprep.subr.mxu0 0.0
    %309 = vmatpush1.msra.mxu0 0.0
    %310 = vmatprep.subr.mxu0 0.0
    %311 = vmatpush1.msra.mxu0 0.0
    %312 = vmatprep.subr.mxu0 0.0
    %313 = vmatpush1.msra.mxu0 0.0
    %314 = vmatprep.subr.mxu0 0.0
    %315 = vmatpush1.msra.mxu0 0.0
    %316 = vmatprep.subr.mxu0 0.0
    %317 = vmatpush1.msra.mxu0 0.0
    %318 = vmatprep.subr.mxu0 0.0
    %319 = vmatpush1.msra.mxu0 0.0
    %320 = vmatprep.subr.mxu0 0.0
    %321 = vmatpush1.msra.mxu0 0.0
    %322 = vmatprep.subr.mxu0 0.0
    %323 = vmatpush1.msra.mxu0 0.0
    %324 = vmatprep.subr.mxu0 0.0
    %325 = vmatpush1.msra.mxu0 0.0
    %326 = vmatprep.subr.mxu0 0.0
    %327 = vmatpush1.msra.mxu0 0.0
    %328 = vmatprep.subr.mxu0 0.0
    %329 = vmatpush1.msra.mxu0 0.0
    %330 = vmatprep.subr.mxu0 0.0
    %331 = vmatpush1.msra.mxu0 0.0
    %332 = vmatprep.subr.mxu0 0.0
    %333 = vmatpush1.msra.mxu0 0.0
    %334 = vmatprep.mubr.f32.mxu0 0.0
    %335 = vmatmul.mubr.f32.gmra.mrb[0].mxu0 %v268
    %v336 = vpop.f32.mrb[0].mxu0
    %v337 = vadd.f32 0.0, %v336
    %v338 = vpop.f32.mrb[0].mxu0
    %v339 = vadd.f32 0.0, %v338
    %340 = vdwg.mxu0
    %v343 = vrot.slane %v337, 6
    %v344 = vrot.slane %v339, 6
    %v347 = vadd.f32 %v140, %v343
    %v348 = vadd.f32 %v142, %v344
    %v349 = vxor.u32 %v347, 2147483648
    %v350 = vmul.f32 %v349, 1.442695
    %v351 = vpow.pop %v350
    %v352 = vadd.f32 %v351, 1.0
    %v353 = vrcp.pop %v352
    %v354 = vmul.f32 1.0, %v353
    %v355 = vtanh.pop %v348
    %v356 = vxor.u32 %v348, 2147483648
    %v357 = vmul.f32 %v356, 1.442695
    %v358 = vpow.pop %v357
    %v359 = vadd.f32 %v358, 1.0
    %v360 = vrcp.pop %v359
    %v361 = vmul.f32 1.0, %v360
    %v363 = vrot.slane %v262, 6
    %v365 = vmul.f32 %v354, %v363
    %v366 = vmul.f32 %v354, %v355
    %368 = vrot.lane.b32.xlu0 %v366, 64
    %v369 = vpop.permute.xlu0 %368
    %v371 = vadd.f32 %v365, %v369
    %v372 = vtanh.pop %v371
    %v373 = vmul.f32 %v361, %v372
    %v375 = vrot.slane %v373, 2
    %376 = vrot.lane.b32.xlu0 %v375, 64
    %v377 = vpop.permute.xlu0 %376
    %v378 = vsel %vm166, %v377, 0
    %380 = vmatprep.subr.mxu0 %v151
    %381 = vmatpush1.msra.mxu0 %v150
    %382 = vmatprep.subr.mxu0 %v153
    %383 = vmatpush1.msra.mxu0 %v152
    %384 = vmatprep.subr.mxu0 %v155
    %385 = vmatpush1.msra.mxu0 %v154
    %386 = vmatprep.subr.mxu0 %v157
    %387 = vmatpush1.msra.mxu0 %v156
    %388 = vmatprep.subr.mxu0 %v159
    %389 = vmatpush1.msra.mxu0 %v158
    %390 = vmatprep.subr.mxu0 %v161
    %391 = vmatpush1.msra.mxu0 %v160
    %392 = vmatprep.subr.mxu0 %v163
    %393 = vmatpush1.msra.mxu0 %v162
    %394 = vmatprep.subr.mxu0 %v165
    %395 = vmatpush1.msra.mxu0 %v164
    %396 = vmatprep.subr.mxu0 0.0
    %397 = vmatpush1.msra.mxu0 0.0
    %398 = vmatprep.subr.mxu0 0.0
    %399 = vmatpush1.msra.mxu0 0.0
    %400 = vmatprep.subr.mxu0 0.0
    %401 = vmatpush1.msra.mxu0 0.0
    %402 = vmatprep.subr.mxu0 0.0
    %403 = vmatpush1.msra.mxu0 0.0
    %404 = vmatprep.subr.mxu0 0.0
    %405 = vmatpush1.msra.mxu0 0.0
    %406 = vmatprep.subr.mxu0 0.0
    %407 = vmatpush1.msra.mxu0 0.0
    %408 = vmatprep.subr.mxu0 0.0
    %409 = vmatpush1.msra.mxu0 0.0
    %410 = vmatprep.subr.mxu0 0.0
    %411 = vmatpush1.msra.mxu0 0.0
    %412 = vmatprep.subr.mxu0 0.0
    %413 = vmatpush1.msra.mxu0 0.0
    %414 = vmatprep.subr.mxu0 0.0
    %415 = vmatpush1.msra.mxu0 0.0
    %416 = vmatprep.subr.mxu0 0.0
    %417 = vmatpush1.msra.mxu0 0.0
    %418 = vmatprep.subr.mxu0 0.0
    %419 = vmatpush1.msra.mxu0 0.0
    %420 = vmatprep.subr.mxu0 0.0
    %421 = vmatpush1.msra.mxu0 0.0
    %422 = vmatprep.subr.mxu0 0.0
    %423 = vmatpush1.msra.mxu0 0.0
    %424 = vmatprep.subr.mxu0 0.0
    %425 = vmatpush1.msra.mxu0 0.0
    %426 = vmatprep.subr.mxu0 0.0
    %427 = vmatpush1.msra.mxu0 0.0
    %428 = vmatprep.subr.mxu0 0.0
    %429 = vmatpush1.msra.mxu0 0.0
    %430 = vmatprep.subr.mxu0 0.0
    %431 = vmatpush1.msra.mxu0 0.0
    %432 = vmatprep.subr.mxu0 0.0
    %433 = vmatpush1.msra.mxu0 0.0
    %434 = vmatprep.subr.mxu0 0.0
    %435 = vmatpush1.msra.mxu0 0.0
    %436 = vmatprep.subr.mxu0 0.0
    %437 = vmatpush1.msra.mxu0 0.0
    %438 = vmatprep.subr.mxu0 0.0
    %439 = vmatpush1.msra.mxu0 0.0
    %440 = vmatprep.subr.mxu0 0.0
    %441 = vmatpush1.msra.mxu0 0.0
    %442 = vmatprep.subr.mxu0 0.0
    %443 = vmatpush1.msra.mxu0 0.0
    %444 = vmatprep.mubr.f32.mxu0 0.0
    %445 = vmatmul.mubr.f32.gmra.mrb[0].mxu0 %v378
    %v446 = vpop.f32.mrb[0].mxu0
    %v447 = vadd.f32 0.0, %v446
    %v448 = vpop.f32.mrb[0].mxu0
    %v449 = vadd.f32 0.0, %v448
    %450 = vdwg.mxu0
    %v453 = vrot.slane %v447, 4
    %v454 = vrot.slane %v449, 4
    %v457 = vadd.f32 %v140, %v453
    %v458 = vadd.f32 %v142, %v454
    %v459 = vxor.u32 %v457, 2147483648
    %v460 = vmul.f32 %v459, 1.442695
    %v461 = vpow.pop %v460
    %v462 = vadd.f32 %v461, 1.0
    %v463 = vrcp.pop %v462
    %v464 = vmul.f32 1.0, %v463
    %v465 = vtanh.pop %v458
    %v466 = vxor.u32 %v458, 2147483648
    %v467 = vmul.f32 %v466, 1.442695
    %v468 = vpow.pop %v467
    %v469 = vadd.f32 %v468, 1.0
    %v470 = vrcp.pop %v469
    %v471 = vmul.f32 1.0, %v470
    %v473 = vrot.slane %v371, 6
    %v475 = vmul.f32 %v464, %v473
    %v476 = vmul.f32 %v464, %v465
    %478 = vrot.lane.b32.xlu0 %v476, 64
    %v479 = vpop.permute.xlu0 %478
    %v481 = vadd.f32 %v475, %v479
    %v482 = vtanh.pop %v481
    %v483 = vmul.f32 %v471, %v482
    %v485 = vrot.slane %v483, 4
    %486 = vrot.lane.b32.xlu0 %v485, 64
    %v487 = vpop.permute.xlu0 %486
    %v488 = vsel %vm166, %v487, 0
    %490 = vmatprep.subr.mxu0 %v151
    %491 = vmatpush1.msra.mxu0 %v150
    %492 = vmatprep.subr.mxu0 %v153
    %493 = vmatpush1.msra.mxu0 %v152
    %494 = vmatprep.subr.mxu0 %v155
    %495 = vmatpush1.msra.mxu0 %v154
    %496 = vmatprep.subr.mxu0 %v157
    %497 = vmatpush1.msra.mxu0 %v156
    %498 = vmatprep.subr.mxu0 %v159
    %499 = vmatpush1.msra.mxu0 %v158
    %500 = vmatprep.subr.mxu0 %v161
    %501 = vmatpush1.msra.mxu0 %v160
    %502 = vmatprep.subr.mxu0 %v163
    %503 = vmatpush1.msra.mxu0 %v162
    %504 = vmatprep.subr.mxu0 %v165
    %505 = vmatpush1.msra.mxu0 %v164
    %506 = vmatprep.subr.mxu0 0.0
    %507 = vmatpush1.msra.mxu0 0.0
    %508 = vmatprep.subr.mxu0 0.0
    %509 = vmatpush1.msra.mxu0 0.0
    %510 = vmatprep.subr.mxu0 0.0
    %511 = vmatpush1.msra.mxu0 0.0
    %512 = vmatprep.subr.mxu0 0.0
    %513 = vmatpush1.msra.mxu0 0.0
    %514 = vmatprep.subr.mxu0 0.0
    %515 = vmatpush1.msra.mxu0 0.0
    %516 = vmatprep.subr.mxu0 0.0
    %517 = vmatpush1.msra.mxu0 0.0
    %518 = vmatprep.subr.mxu0 0.0
    %519 = vmatpush1.msra.mxu0 0.0
    %520 = vmatprep.subr.mxu0 0.0
    %521 = vmatpush1.msra.mxu0 0.0
    %522 = vmatprep.subr.mxu0 0.0
    %523 = vmatpush1.msra.mxu0 0.0
    %524 = vmatprep.subr.mxu0 0.0
    %525 = vmatpush1.msra.mxu0 0.0
    %526 = vmatprep.subr.mxu0 0.0
    %527 = vmatpush1.msra.mxu0 0.0
    %528 = vmatprep.subr.mxu0 0.0
    %529 = vmatpush1.msra.mxu0 0.0
    %530 = vmatprep.subr.mxu0 0.0
    %531 = vmatpush1.msra.mxu0 0.0
    %532 = vmatprep.subr.mxu0 0.0
    %533 = vmatpush1.msra.mxu0 0.0
    %534 = vmatprep.subr.mxu0 0.0
    %535 = vmatpush1.msra.mxu0 0.0
    %536 = vmatprep.subr.mxu0 0.0
    %537 = vmatpush1.msra.mxu0 0.0
    %538 = vmatprep.subr.mxu0 0.0
    %539 = vmatpush1.msra.mxu0 0.0
    %540 = vmatprep.subr.mxu0 0.0
    %541 = vmatpush1.msra.mxu0 0.0
    %542 = vmatprep.subr.mxu0 0.0
    %543 = vmatpush1.msra.mxu0 0.0
    %544 = vmatprep.subr.mxu0 0.0
    %545 = vmatpush1.msra.mxu0 0.0
    %546 = vmatprep.subr.mxu0 0.0
    %547 = vmatpush1.msra.mxu0 0.0
    %548 = vmatprep.subr.mxu0 0.0
    %549 = vmatpush1.msra.mxu0 0.0
    %550 = vmatprep.subr.mxu0 0.0
    %551 = vmatpush1.msra.mxu0 0.0
    %552 = vmatprep.subr.mxu0 0.0
    %553 = vmatpush1.msra.mxu0 0.0
    %554 = vmatprep.mubr.f32.mxu0 0.0
    %555 = vmatmul.mubr.f32.gmra.mrb[0].mxu0 %v488
    %v556 = vpop.f32.mrb[0].mxu0
    %v557 = vadd.f32 0.0, %v556
    %v558 = vpop.f32.mrb[0].mxu0
    %v559 = vadd.f32 0.0, %v558
    %560 = vdwg.mxu0
    %v563 = vrot.slane %v557, 2
    %v564 = vrot.slane %v559, 2
    %v567 = vadd.f32 %v140, %v563
    %v568 = vadd.f32 %v142, %v564
    %v569 = vxor.u32 %v567, 2147483648
    %v570 = vmul.f32 %v569, 1.442695
    %v571 = vpow.pop %v570
    %v572 = vadd.f32 %v571, 1.0
    %v573 = vrcp.pop %v572
    %v574 = vmul.f32 1.0, %v573
    %v575 = vtanh.pop %v568
    %v576 = vxor.u32 %v568, 2147483648
    %v577 = vmul.f32 %v576, 1.442695
    %v578 = vpow.pop %v577
    %v579 = vadd.f32 %v578, 1.0
    %v580 = vrcp.pop %v579
    %v581 = vmul.f32 1.0, %v580
    %v583 = vrot.slane %v481, 6
    %v585 = vmul.f32 %v574, %v583
    %v586 = vmul.f32 %v574, %v575
    %588 = vrot.lane.b32.xlu0 %v586, 64
    %v589 = vpop.permute.xlu0 %588
    %v591 = vadd.f32 %v585, %v589
    %v592 = vtanh.pop %v591
    %v593 = vmul.f32 %v581, %v592
    %v595 = vrot.slane %v593, 6
    %596 = vrot.lane.b32.xlu0 %v595, 64
    %v597 = vpop.permute.xlu0 %596
    %v598 = vsel %vm166, %v597, 0
    %600 = vmatprep.subr.mxu0 %v151
    %601 = vmatpush1.msra.mxu0 %v150
    %602 = vmatprep.subr.mxu0 %v153
    %603 = vmatpush1.msra.mxu0 %v152
    %604 = vmatprep.subr.mxu0 %v155
    %605 = vmatpush1.msra.mxu0 %v154
    %606 = vmatprep.subr.mxu0 %v157
    %607 = vmatpush1.msra.mxu0 %v156
    %608 = vmatprep.subr.mxu0 %v159
    %609 = vmatpush1.msra.mxu0 %v158
    %610 = vmatprep.subr.mxu0 %v161
    %611 = vmatpush1.msra.mxu0 %v160
    %612 = vmatprep.subr.mxu0 %v163
    %613 = vmatpush1.msra.mxu0 %v162
    %614 = vmatprep.subr.mxu0 %v165
    %615 = vmatpush1.msra.mxu0 %v164
    %616 = vmatprep.subr.mxu0 0.0
    %617 = vmatpush1.msra.mxu0 0.0
    %618 = vmatprep.subr.mxu0 0.0
    %619 = vmatpush1.msra.mxu0 0.0
    %620 = vmatprep.subr.mxu0 0.0
    %621 = vmatpush1.msra.mxu0 0.0
    %622 = vmatprep.subr.mxu0 0.0
    %623 = vmatpush1.msra.mxu0 0.0
    %624 = vmatprep.subr.mxu0 0.0
    %625 = vmatpush1.msra.mxu0 0.0
    %626 = vmatprep.subr.mxu0 0.0
    %627 = vmatpush1.msra.mxu0 0.0
    %628 = vmatprep.subr.mxu0 0.0
    %629 = vmatpush1.msra.mxu0 0.0
    %630 = vmatprep.subr.mxu0 0.0
    %631 = vmatpush1.msra.mxu0 0.0
    %632 = vmatprep.subr.mxu0 0.0
    %633 = vmatpush1.msra.mxu0 0.0
    %634 = vmatprep.subr.mxu0 0.0
    %635 = vmatpush1.msra.mxu0 0.0
    %636 = vmatprep.subr.mxu0 0.0
    %637 = vmatpush1.msra.mxu0 0.0
    %638 = vmatprep.subr.mxu0 0.0
    %639 = vmatpush1.msra.mxu0 0.0
    %640 = vmatprep.subr.mxu0 0.0
    %641 = vmatpush1.msra.mxu0 0.0
    %642 = vmatprep.subr.mxu0 0.0
    %643 = vmatpush1.msra.mxu0 0.0
    %644 = vmatprep.subr.mxu0 0.0
    %645 = vmatpush1.msra.mxu0 0.0
    %646 = vmatprep.subr.mxu0 0.0
    %647 = vmatpush1.msra.mxu0 0.0
    %648 = vmatprep.subr.mxu0 0.0
    %649 = vmatpush1.msra.mxu0 0.0
    %650 = vmatprep.subr.mxu0 0.0
    %651 = vmatpush1.msra.mxu0 0.0
    %652 = vmatprep.subr.mxu0 0.0
    %653 = vmatpush1.msra.mxu0 0.0
    %654 = vmatprep.subr.mxu0 0.0
    %655 = vmatpush1.msra.mxu0 0.0
    %656 = vmatprep.subr.mxu0 0.0
    %657 = vmatpush1.msra.mxu0 0.0
    %658 = vmatprep.subr.mxu0 0.0
    %659 = vmatpush1.msra.mxu0 0.0
    %660 = vmatprep.subr.mxu0 0.0
    %661 = vmatpush1.msra.mxu0 0.0
    %662 = vmatprep.subr.mxu0 0.0
    %663 = vmatpush1.msra.mxu0 0.0
    %664 = vmatprep.mubr.f32.mxu0 0.0
    %665 = vmatmul.mubr.f32.gmra.mrb[0].mxu0 %v598
    %v666 = vpop.f32.mrb[0].mxu0
    %v667 = vadd.f32 0.0, %v666
    %v668 = vpop.f32.mrb[0].mxu0
    %v669 = vadd.f32 0.0, %v668
    %670 = vdwg.mxu0
    %v671 = vadd.f32 %v146, %v667
    %v672 = vadd.f32 %v148, %v669
    %v673 = vxor.u32 %v671, 2147483648
    %v674 = vmul.f32 %v673, 1.442695
    %v675 = vpow.pop %v674
    %v676 = vadd.f32 %v675, 1.0
    %v677 = vrcp.pop %v676
    %v678 = vmul.f32 1.0, %v677
    %v679 = vtanh.pop %v672
    %v680 = vxor.u32 %v672, 2147483648
    %v681 = vmul.f32 %v680, 1.442695
    %v682 = vpow.pop %v681
    %v683 = vadd.f32 %v682, 1.0
    %v684 = vrcp.pop %v683
    %v685 = vmul.f32 1.0, %v684
    %v687 = vrot.slane %v591, 6
    %v689 = vmul.f32 %v678, %v687
    %v690 = vmul.f32 %v678, %v679
    %692 = vrot.lane.b32.xlu0 %v690, 64
    %v693 = vpop.permute.xlu0 %692
    %v695 = vadd.f32 %v689, %v693
    %v696 = vtanh.pop %v695
    %v697 = vmul.f32 %v685, %v696
    %699 = vrot.lane.b32.xlu0 %v697, 64
    %v700 = vpop.permute.xlu0 %699
    %v701 = vsel %vm166, %v700, 0
    %703 = vmatprep.subr.mxu0 %v151
    %704 = vmatpush1.msra.mxu0 %v150
    %705 = vmatprep.subr.mxu0 %v153
    %706 = vmatpush1.msra.mxu0 %v152
    %707 = vmatprep.subr.mxu0 %v155
    %708 = vmatpush1.msra.mxu0 %v154
    %709 = vmatprep.subr.mxu0 %v157
    %710 = vmatpush1.msra.mxu0 %v156
    %711 = vmatprep.subr.mxu0 %v159
    %712 = vmatpush1.msra.mxu0 %v158
    %713 = vmatprep.subr.mxu0 %v161
    %714 = vmatpush1.msra.mxu0 %v160
    %715 = vmatprep.subr.mxu0 %v163
    %716 = vmatpush1.msra.mxu0 %v162
    %717 = vmatprep.subr.mxu0 %v165
    %718 = vmatpush1.msra.mxu0 %v164
    %719 = vmatprep.subr.mxu0 0.0
    %720 = vmatpush1.msra.mxu0 0.0
    %721 = vmatprep.subr.mxu0 0.0
    %722 = vmatpush1.msra.mxu0 0.0
    %723 = vmatprep.subr.mxu0 0.0
    %724 = vmatpush1.msra.mxu0 0.0
    %725 = vmatprep.subr.mxu0 0.0
    %726 = vmatpush1.msra.mxu0 0.0
    %727 = vmatprep.subr.mxu0 0.0
    %728 = vmatpush1.msra.mxu0 0.0
    %729 = vmatprep.subr.mxu0 0.0
    %730 = vmatpush1.msra.mxu0 0.0
    %731 = vmatprep.subr.mxu0 0.0
    %732 = vmatpush1.msra.mxu0 0.0
    %733 = vmatprep.subr.mxu0 0.0
    %734 = vmatpush1.msra.mxu0 0.0
    %735 = vmatprep.subr.mxu0 0.0
    %736 = vmatpush1.msra.mxu0 0.0
    %737 = vmatprep.subr.mxu0 0.0
    %738 = vmatpush1.msra.mxu0 0.0
    %739 = vmatprep.subr.mxu0 0.0
    %740 = vmatpush1.msra.mxu0 0.0
    %741 = vmatprep.subr.mxu0 0.0
    %742 = vmatpush1.msra.mxu0 0.0
    %743 = vmatprep.subr.mxu0 0.0
    %744 = vmatpush1.msra.mxu0 0.0
    %745 = vmatprep.subr.mxu0 0.0
    %746 = vmatpush1.msra.mxu0 0.0
    %747 = vmatprep.subr.mxu0 0.0
    %748 = vmatpush1.msra.mxu0 0.0
    %749 = vmatprep.subr.mxu0 0.0
    %750 = vmatpush1.msra.mxu0 0.0
    %751 = vmatprep.subr.mxu0 0.0
    %752 = vmatpush1.msra.mxu0 0.0
    %753 = vmatprep.subr.mxu0 0.0
    %754 = vmatpush1.msra.mxu0 0.0
    %755 = vmatprep.subr.mxu0 0.0
    %756 = vmatpush1.msra.mxu0 0.0
    %757 = vmatprep.subr.mxu0 0.0
    %758 = vmatpush1.msra.mxu0 0.0
    %759 = vmatprep.subr.mxu0 0.0
    %760 = vmatpush1.msra.mxu0 0.0
    %761 = vmatprep.subr.mxu0 0.0
    %762 = vmatpush1.msra.mxu0 0.0
    %763 = vmatprep.subr.mxu0 0.0
    %764 = vmatpush1.msra.mxu0 0.0
    %765 = vmatprep.subr.mxu0 0.0
    %766 = vmatpush1.msra.mxu0 0.0
    %767 = vmatprep.mubr.f32.mxu0 0.0
    %768 = vmatmul.mubr.f32.gmra.mrb[0].mxu0 %v701
    %v769 = vpop.f32.mrb[0].mxu0
    %v770 = vadd.f32 0.0, %v769
    %v771 = vpop.f32.mrb[0].mxu0
    %v772 = vadd.f32 0.0, %v771
    %773 = vdwg.mxu0
    %v776 = vrot.slane %v770, 6
    %v777 = vrot.slane %v772, 6
    %v780 = vadd.f32 %v146, %v776
    %v781 = vadd.f32 %v148, %v777
    %v782 = vxor.u32 %v780, 2147483648
    %v783 = vmul.f32 %v782, 1.442695
    %v784 = vpow.pop %v783
    %v785 = vadd.f32 %v784, 1.0
    %v786 = vrcp.pop %v785
    %v787 = vmul.f32 1.0, %v786
    %v788 = vtanh.pop %v781
    %v789 = vxor.u32 %v781, 2147483648
    %v790 = vmul.f32 %v789, 1.442695
    %v791 = vpow.pop %v790
    %v792 = vadd.f32 %v791, 1.0
    %v793 = vrcp.pop %v792
    %v794 = vmul.f32 1.0, %v793
    %v796 = vrot.slane %v695, 6
    %v798 = vmul.f32 %v787, %v796
    %v799 = vmul.f32 %v787, %v788
    %801 = vrot.lane.b32.xlu0 %v799, 64
    %v802 = vpop.permute.xlu0 %801
    %v804 = vadd.f32 %v798, %v802
    %v805 = vtanh.pop %v804
    %v806 = vmul.f32 %v794, %v805
    %v808 = vrot.slane %v806, 2
    %809 = vrot.lane.b32.xlu0 %v808, 64
    %v810 = vpop.permute.xlu0 %809
    %v811 = vsel %vm166, %v810, 0
    %813 = vmatprep.subr.mxu0 %v151
    %814 = vmatpush1.msra.mxu0 %v150
    %815 = vmatprep.subr.mxu0 %v153
    %816 = vmatpush1.msra.mxu0 %v152
    %817 = vmatprep.subr.mxu0 %v155
    %818 = vmatpush1.msra.mxu0 %v154
    %819 = vmatprep.subr.mxu0 %v157
    %820 = vmatpush1.msra.mxu0 %v156
    %821 = vmatprep.subr.mxu0 %v159
    %822 = vmatpush1.msra.mxu0 %v158
    %823 = vmatprep.subr.mxu0 %v161
    %824 = vmatpush1.msra.mxu0 %v160
    %825 = vmatprep.subr.mxu0 %v163
    %826 = vmatpush1.msra.mxu0 %v162
    %827 = vmatprep.subr.mxu0 %v165
    %828 = vmatpush1.msra.mxu0 %v164
    %829 = vmatprep.subr.mxu0 0.0
    %830 = vmatpush1.msra.mxu0 0.0
    %831 = vmatprep.subr.mxu0 0.0
    %832 = vmatpush1.msra.mxu0 0.0
    %833 = vmatprep.subr.mxu0 0.0
    %834 = vmatpush1.msra.mxu0 0.0
    %835 = vmatprep.subr.mxu0 0.0
    %836 = vmatpush1.msra.mxu0 0.0
    %837 = vmatprep.subr.mxu0 0.0
    %838 = vmatpush1.msra.mxu0 0.0
    %839 = vmatprep.subr.mxu0 0.0
    %840 = vmatpush1.msra.mxu0 0.0
    %841 = vmatprep.subr.mxu0 0.0
    %842 = vmatpush1.msra.mxu0 0.0
    %843 = vmatprep.subr.mxu0 0.0
    %844 = vmatpush1.msra.mxu0 0.0
    %845 = vmatprep.subr.mxu0 0.0
    %846 = vmatpush1.msra.mxu0 0.0
    %847 = vmatprep.subr.mxu0 0.0
    %848 = vmatpush1.msra.mxu0 0.0
    %849 = vmatprep.subr.mxu0 0.0
    %850 = vmatpush1.msra.mxu0 0.0
    %851 = vmatprep.subr.mxu0 0.0
    %852 = vmatpush1.msra.mxu0 0.0
    %853 = vmatprep.subr.mxu0 0.0
    %854 = vmatpush1.msra.mxu0 0.0
    %855 = vmatprep.subr.mxu0 0.0
    %856 = vmatpush1.msra.mxu0 0.0
    %857 = vmatprep.subr.mxu0 0.0
    %858 = vmatpush1.msra.mxu0 0.0
    %859 = vmatprep.subr.mxu0 0.0
    %860 = vmatpush1.msra.mxu0 0.0
    %861 = vmatprep.subr.mxu0 0.0
    %862 = vmatpush1.msra.mxu0 0.0
    %863 = vmatprep.subr.mxu0 0.0
    %864 = vmatpush1.msra.mxu0 0.0
    %865 = vmatprep.subr.mxu0 0.0
    %866 = vmatpush1.msra.mxu0 0.0
    %867 = vmatprep.subr.mxu0 0.0
    %868 = vmatpush1.msra.mxu0 0.0
    %869 = vmatprep.subr.mxu0 0.0
    %870 = vmatpush1.msra.mxu0 0.0
    %871 = vmatprep.subr.mxu0 0.0
    %872 = vmatpush1.msra.mxu0 0.0
    %873 = vmatprep.subr.mxu0 0.0
    %874 = vmatpush1.msra.mxu0 0.0
    %875 = vmatprep.subr.mxu0 0.0
    %876 = vmatpush1.msra.mxu0 0.0
    %877 = vmatprep.mubr.f32.mxu0 0.0
    %878 = vmatmul.mubr.f32.gmra.mrb[0].mxu0 %v811
    %v879 = vpop.f32.mrb[0].mxu0
    %v880 = vadd.f32 0.0, %v879
    %v881 = vpop.f32.mrb[0].mxu0
    %v882 = vadd.f32 0.0, %v881
    %883 = vdwg.mxu0
    %v886 = vrot.slane %v880, 4
    %v887 = vrot.slane %v882, 4
    %v890 = vadd.f32 %v146, %v886
    %v891 = vadd.f32 %v148, %v887
    %v892 = vxor.u32 %v890, 2147483648
    %v893 = vmul.f32 %v892, 1.442695
    %v894 = vpow.pop %v893
    %v895 = vadd.f32 %v894, 1.0
    %v896 = vrcp.pop %v895
    %v897 = vmul.f32 1.0, %v896
    %v898 = vtanh.pop %v891
    %v899 = vxor.u32 %v891, 2147483648
    %v900 = vmul.f32 %v899, 1.442695
    %v901 = vpow.pop %v900
    %v902 = vadd.f32 %v901, 1.0
    %v903 = vrcp.pop %v902
    %v904 = vmul.f32 1.0, %v903
    %v906 = vrot.slane %v804, 6
    %v908 = vmul.f32 %v897, %v906
    %v909 = vmul.f32 %v897, %v898
    %911 = vrot.lane.b32.xlu0 %v909, 64
    %v912 = vpop.permute.xlu0 %911
    %v914 = vadd.f32 %v908, %v912
    %v915 = vtanh.pop %v914
    %v916 = vmul.f32 %v904, %v915
    %v918 = vrot.slane %v916, 4
    %919 = vrot.lane.b32.xlu0 %v918, 64
    %v920 = vpop.permute.xlu0 %919
    %v921 = vsel %vm166, %v920, 0
    %923 = vmatprep.subr.mxu0 %v151
    %924 = vmatpush1.msra.mxu0 %v150
    %925 = vmatprep.subr.mxu0 %v153
    %926 = vmatpush1.msra.mxu0 %v152
    %927 = vmatprep.subr.mxu0 %v155
    %928 = vmatpush1.msra.mxu0 %v154
    %929 = vmatprep.subr.mxu0 %v157
    %930 = vmatpush1.msra.mxu0 %v156
    %931 = vmatprep.subr.mxu0 %v159
    %932 = vmatpush1.msra.mxu0 %v158
    %933 = vmatprep.subr.mxu0 %v161
    %934 = vmatpush1.msra.mxu0 %v160
    %935 = vmatprep.subr.mxu0 %v163
    %936 = vmatpush1.msra.mxu0 %v162
    %937 = vmatprep.subr.mxu0 %v165
    %938 = vmatpush1.msra.mxu0 %v164
    %939 = vmatprep.subr.mxu0 0.0
    %940 = vmatpush1.msra.mxu0 0.0
    %941 = vmatprep.subr.mxu0 0.0
    %942 = vmatpush1.msra.mxu0 0.0
    %943 = vmatprep.subr.mxu0 0.0
    %944 = vmatpush1.msra.mxu0 0.0
    %945 = vmatprep.subr.mxu0 0.0
    %946 = vmatpush1.msra.mxu0 0.0
    %947 = vmatprep.subr.mxu0 0.0
    %948 = vmatpush1.msra.mxu0 0.0
    %949 = vmatprep.subr.mxu0 0.0
    %950 = vmatpush1.msra.mxu0 0.0
    %951 = vmatprep.subr.mxu0 0.0
    %952 = vmatpush1.msra.mxu0 0.0
    %953 = vmatprep.subr.mxu0 0.0
    %954 = vmatpush1.msra.mxu0 0.0
    %955 = vmatprep.subr.mxu0 0.0
    %956 = vmatpush1.msra.mxu0 0.0
    %957 = vmatprep.subr.mxu0 0.0
    %958 = vmatpush1.msra.mxu0 0.0
    %959 = vmatprep.subr.mxu0 0.0
    %960 = vmatpush1.msra.mxu0 0.0
    %961 = vmatprep.subr.mxu0 0.0
    %962 = vmatpush1.msra.mxu0 0.0
    %963 = vmatprep.subr.mxu0 0.0
    %964 = vmatpush1.msra.mxu0 0.0
    %965 = vmatprep.subr.mxu0 0.0
    %966 = vmatpush1.msra.mxu0 0.0
    %967 = vmatprep.subr.mxu0 0.0
    %968 = vmatpush1.msra.mxu0 0.0
    %969 = vmatprep.subr.mxu0 0.0
    %970 = vmatpush1.msra.mxu0 0.0
    %971 = vmatprep.subr.mxu0 0.0
    %972 = vmatpush1.msra.mxu0 0.0
    %973 = vmatprep.subr.mxu0 0.0
    %974 = vmatpush1.msra.mxu0 0.0
    %975 = vmatprep.subr.mxu0 0.0
    %976 = vmatpush1.msra.mxu0 0.0
    %977 = vmatprep.subr.mxu0 0.0
    %978 = vmatpush1.msra.mxu0 0.0
    %979 = vmatprep.subr.mxu0 0.0
    %980 = vmatpush1.msra.mxu0 0.0
    %981 = vmatprep.subr.mxu0 0.0
    %982 = vmatpush1.msra.mxu0 0.0
    %983 = vmatprep.subr.mxu0 0.0
    %984 = vmatpush1.msra.mxu0 0.0
    %985 = vmatprep.subr.mxu0 0.0
    %986 = vmatpush1.msra.mxu0 0.0
    %987 = vmatprep.mubr.f32.mxu0 0.0
    %988 = vmatmul.mubr.f32.gmra.mrb[0].mxu0 %v921
    %v989 = vpop.f32.mrb[0].mxu0
    %v990 = vadd.f32 0.0, %v989
    %v991 = vpop.f32.mrb[0].mxu0
    %v992 = vadd.f32 0.0, %v991
    %993 = vdwg.mxu0
    %v996 = vrot.slane %v990, 2
    %v997 = vrot.slane %v992, 2
    %v1000 = vadd.f32 %v146, %v996
    %v1001 = vadd.f32 %v148, %v997
    %v1002 = vxor.u32 %v1000, 2147483648
    %v1003 = vmul.f32 %v1002, 1.442695
    %v1004 = vpow.pop %v1003
    %v1005 = vadd.f32 %v1004, 1.0
    %v1006 = vrcp.pop %v1005
    %v1007 = vmul.f32 1.0, %v1006
    %v1008 = vtanh.pop %v1001
    %v1009 = vxor.u32 %v1001, 2147483648
    %v1010 = vmul.f32 %v1009, 1.442695
    %v1011 = vpow.pop %v1010
    %v1012 = vadd.f32 %v1011, 1.0
    %v1013 = vrcp.pop %v1012
    %v1014 = vmul.f32 1.0, %v1013
    %v1016 = vrot.slane %v914, 6
    %v1018 = vmul.f32 %v1007, %v1016
    %v1019 = vmul.f32 %v1007, %v1008
    %1021 = vrot.lane.b32.xlu0 %v1019, 64
    %v1022 = vpop.permute.xlu0 %1021
    %v1024 = vadd.f32 %v1018, %v1022
    %v1025 = vtanh.pop %v1024
    %v1026 = vmul.f32 %v1014, %v1025
    %v1027 = vld [vmem:[%s4] sm:$0xff]
    %v1028 = vld [vmem:[%s4 + $0x8] sm:$0xff]
    %v1029 = vld [vmem:[%s4 + $0x10] sm:$0xff]
    %v1030 = vld [vmem:[%s4 + $0x18] sm:$0xff]
    %v1031 = vld [vmem:[%s4 + $0x20] sm:$0xff]
    %v1032 = vld [vmem:[%s4 + $0x28] sm:$0xff]
    %v1033 = vld [vmem:[%s4 + $0x30] sm:$0xff]
    %v1034 = vld [vmem:[%s4 + $0x38] sm:$0xff]
    %v1035 = vld [vmem:[%s5] sm:$0x1]
    %v1037 = vlaneseq
    %v1038 = vshrl.u32 %v1037, 7
    %v1039 = vsub.s32 0, %v1038
    %v1040 = vrot.slane %v1035, %v1039
    %v1043 = vrot.slane %v1026, 6
    %1044 = vrot.lane.b32.xlu0 %v1043, 64
    %v1045 = vpop.permute.xlu0 %1044
    %v1046 = vsel %vm166, %v1045, 0
    %1048 = vmatprep.subr.mxu0 0.0
    %1049 = vmatpush1.msra.mxu0 %v1027
    %1050 = vmatprep.subr.mxu0 0.0
    %1051 = vmatpush1.msra.mxu0 %v1028
    %1052 = vmatprep.subr.mxu0 0.0
    %1053 = vmatpush1.msra.mxu0 %v1029
    %1054 = vmatprep.subr.mxu0 0.0
    %1055 = vmatpush1.msra.mxu0 %v1030
    %1056 = vmatprep.subr.mxu0 0.0
    %1057 = vmatpush1.msra.mxu0 %v1031
    %1058 = vmatprep.subr.mxu0 0.0
    %1059 = vmatpush1.msra.mxu0 %v1032
    %1060 = vmatprep.subr.mxu0 0.0
    %1061 = vmatpush1.msra.mxu0 %v1033
    %1062 = vmatprep.subr.mxu0 0.0
    %1063 = vmatpush1.msra.mxu0 %v1034
    %1064 = vmatprep.subr.mxu0 0.0
    %1065 = vmatpush1.msra.mxu0 0.0
    %1066 = vmatprep.subr.mxu0 0.0
    %1067 = vmatpush1.msra.mxu0 0.0
    %1068 = vmatprep.subr.mxu0 0.0
    %1069 = vmatpush1.msra.mxu0 0.0
    %1070 = vmatprep.subr.mxu0 0.0
    %1071 = vmatpush1.msra.mxu0 0.0
    %1072 = vmatprep.subr.mxu0 0.0
    %1073 = vmatpush1.msra.mxu0 0.0
    %1074 = vmatprep.subr.mxu0 0.0
    %1075 = vmatpush1.msra.mxu0 0.0
    %1076 = vmatprep.subr.mxu0 0.0
    %1077 = vmatpush1.msra.mxu0 0.0
    %1078 = vmatprep.subr.mxu0 0.0
    %1079 = vmatpush1.msra.mxu0 0.0
    %1080 = vmatprep.subr.mxu0 0.0
    %1081 = vmatpush1.msra.mxu0 0.0
    %1082 = vmatprep.subr.mxu0 0.0
    %1083 = vmatpush1.msra.mxu0 0.0
    %1084 = vmatprep.subr.mxu0 0.0
    %1085 = vmatpush1.msra.mxu0 0.0
    %1086 = vmatprep.subr.mxu0 0.0
    %1087 = vmatpush1.msra.mxu0 0.0
    %1088 = vmatprep.subr.mxu0 0.0
    %1089 = vmatpush1.msra.mxu0 0.0
    %1090 = vmatprep.subr.mxu0 0.0
    %1091 = vmatpush1.msra.mxu0 0.0
    %1092 = vmatprep.subr.mxu0 0.0
    %1093 = vmatpush1.msra.mxu0 0.0
    %1094 = vmatprep.subr.mxu0 0.0
    %1095 = vmatpush1.msra.mxu0 0.0
    %1096 = vmatprep.subr.mxu0 0.0
    %1097 = vmatpush1.msra.mxu0 0.0
    %1098 = vmatprep.subr.mxu0 0.0
    %1099 = vmatpush1.msra.mxu0 0.0
    %1100 = vmatprep.subr.mxu0 0.0
    %1101 = vmatpush1.msra.mxu0 0.0
    %1102 = vmatprep.subr.mxu0 0.0
    %1103 = vmatpush1.msra.mxu0 0.0
    %1104 = vmatprep.subr.mxu0 0.0
    %1105 = vmatpush1.msra.mxu0 0.0
    %1106 = vmatprep.subr.mxu0 0.0
    %1107 = vmatpush1.msra.mxu0 0.0
    %1108 = vmatprep.subr.mxu0 0.0
    %1109 = vmatpush1.msra.mxu0 0.0
    %1110 = vmatprep.subr.mxu0 0.0
    %1111 = vmatpush1.msra.mxu0 0.0
    %1112 = vmatprep.mubr.f32.mxu0 0.0
    %1113 = vmatmul.mubr.f32.gmra.mrb[0].mxu0 %v1046
    %v1114 = vpop.f32.mrb[0].mxu0
    %v1115 = vadd.f32 %v1040, %v1114
    %v1116 = vpop.f32.mrb[0].mxu0
    %1117 = vdwg.mxu0
    %v1118 = vmul.f32 %v1115, 0.5
    %v1119 = vmul.f32 %v1118, 1.442695
    %v1120 = vpow.pop %v1119
    %v1121 = vld [vmem:[%s6] sm:$0x3]
    %1123 = vrot.lane.b32.xlu0 %v1121, 16
    %v1124 = vpop.permute.xlu0 %1123
    %v1126 = vmul.f32 %v1120, %v1124
    %1128 = vrot.lane.b32.xlu0 %v1126, 112
    %v1129 = vpop.permute.xlu0 %1128
    %v1131 = vadd.f32 %v1115, %v1129
    %1133 = vrot.lane.b32.xlu0 %v1115, 16
    %v1134 = vpop.permute.xlu0 %1133
    %1137 = vrot.lane.b32.xlu0 %v1120, 16
    %v1138 = vpop.permute.xlu0 %1137
    %vm1140 = vcmask 130048
    %v1141 = vsel %vm1140, %v1131, %v1134
    %vm1142 = vcmask 261120
    %v1143 = vsel %vm1142, %v1141, %v1138
    %vm1144 = vcmask 386048
    %1145 = vst.msk [vmem:[#allocation5] sm:$0x3] %vm1144, %v1143
    // Predicated region
    $region34: #{tpu_custom_call.1} parent=1 // pred_check
      _
    $region35: #{tpu_custom_call.1} parent=1 // pred_check_branch
      %1147 = sbr.rel (0) target = $region37
    $region36: #{tpu_custom_call.1} parent=1 // pred_region
      %s1149 = ssub.s32 32, 32
      %1150 = vsyncadd [#allocation4], %s1149
      %s1152 = sshll.u32 [#allocation5], 4
      %s1153 = int_to_ptr.vmem [resolvable:$true] %s1152
      %1155 = dma.vmem_to_hbm [thread:$0]  %s1153, 32, %s7, [#allocation4]
    $region37: #{tpu_custom_call.1} parent=1 // pred_fallthru
      _
    // Predicated region
    $region38: #{tpu_custom_call.1} parent=1 // pred_check
      _
    $region39: #{tpu_custom_call.1} parent=1 // pred_check_branch
      %1157 = sbr.rel (0) target = $region41
    $region40: #{tpu_custom_call.1} parent=1 // pred_region
      %1158 = dma.done [#allocation4], 32
    $region41: #{tpu_custom_call.1} parent=1 // pred_fallthru
      _
    %1159 = vsyncpa [#allocation3], 1
    %1160 = vsyncpa [#allocation4], 1

</llo_original>
